<compile_context>
chip_gen: v6e
topology: v6e:2x2x1
jax: 0.10.0
libtpu: 0.0.40
codegen_flags: <defaults>
</compile_context>

<pallas_src>
import functools

import jax
import jax.numpy as jnp
from jax.experimental import pallas as pl
from jax.experimental.pallas import tpu as pltpu


def _vmem_limit_bytes():
    """Generation-aware scoped-VMEM limit.

    128 MiB parts (v5e/v6e) -> 64 MiB; 64 MiB parts (v7x) -> 48 MiB.
    """
    try:
        cap = int(pltpu.get_tpu_info().vmem_capacity_bytes)
    except Exception:  # interpret mode / unknown chip: assume the smallest (v7x)
        cap = 64 * 1024 * 1024
    return min(64 * 1024 * 1024, (cap * 3) // 4)


def _pick_tile_hw(hw, c, in_bytes, tgt_bytes, vmem_limit):
    """Spatial (lane-axis) tile sized from the VMEM budget.

    Accounts for everything that is live in VMEM per lane of the tile:
      2x double-buffered logits blocks (caller dtype) + f32 compute copy +
      ~3 live (C,T) f32 intermediates + 2x target block + resident f32 output.
    Returns the full HW extent when it fits (a full-dim block is always legal),
    otherwise the largest multiple of 128 that fits the budget.
    """
    padded_c = -(-c // 8) * 8                       # sublane padding of the block
    per_lane = (
        2 * padded_c * in_bytes                     # double-buffered input blocks
        + 4 * padded_c * 4                          # f32 copy + ~3 live intermediates
        + 2 * tgt_bytes                             # double-buffered target block
        + 2 * 4                                     # resident f32 accumulator (+slack)
    )
    budget = max(vmem_limit - 8 * 1024 * 1024, 4 * 1024 * 1024)   # compiler headroom
    max_lanes = budget // per_lane
    if hw <= max(max_lanes, 128):
        return int(hw)                              # single full-HW block per row
    # TODO(synk): for very large C (>= ~512) an online-softmax chunking of the
    # class axis would keep the lane tile large instead of shrinking it here.
    return int(max(128, (max_lanes // 128) * 128))


def _focal_loss_kernel(logits_ref, tgt_ref, out_ref, *,
                       gamma, hw, t_hw, steps, n_chunks):
    j = pl.program_id(1)                                  # spatial step (reduction)

    x = logits_ref[0].astype(jnp.float32)                 # (C, T): classes on sublanes
    # numerically stable log-softmax pieces over the channel (sublane) axis
    m = jnp.max(x, axis=0, keepdims=True)                 # (1, T)
    shifted = x - m
    lse = jnp.log(jnp.sum(jnp.exp(shifted), axis=0, keepdims=True))   # (1, T)

    # Gather the target-class shifted logit via a one-hot masked sublane sum.
    # (C,1) iota broadcast against the (1,T) targets avoids a full (C,T) iota.
    tgt = tgt_ref[0].astype(jnp.int32)                    # (1, T)
    cls = jax.lax.broadcasted_iota(jnp.int32, (x.shape[0], 1), 0)     # (C, 1)
    x_t = jnp.sum(jnp.where(cls == tgt, shifted, 0.0), axis=0, keepdims=True)

    log_p_t = x_t - lse                                   # (1, T)
    p_t = jnp.exp(log_p_t)
    per_col = -((1.0 - p_t) ** gamma) * log_p_t           # gamma int -> integer_pow

    # Zero lanes past the flattened spatial extent.  Covers both the partial
    # last block and whole over-cover steps from the chunk split.  MUST stay a
    # select (jnp.where) applied *after* the math: padded lanes may hold
    # garbage -> Inf/NaN, and multiplicative masking would keep the NaN.
    if n_chunks * steps * t_hw != hw:
        if n_chunks == 1:
            blk = j
        else:
            blk = (pl.program_id(0) % n_chunks) * steps + j
        col = blk * t_hw + jax.lax.broadcasted_iota(jnp.int32, per_col.shape, 1)
        per_col = jnp.where(col < hw, per_col, 0.0)

    @pl.when(j == 0)
    def _init():
        out_ref[...] = jnp.zeros_like(out_ref)

    out_ref[...] += per_col[None]                         # (1, 1, T) resident acc


def focal_loss(logits, targets, *, gamma=2, reduction="mean", tile_hw=None):
    """logits: (N, C, H, W) float; targets: (N, H, W) int. weight=None assumed.

    `tile_hw` is a testing override for the spatial tile (multiple of 128).
    """
    assert int(gamma) == gamma, "gamma must be an integer power (VPU integer_pow)"
    gamma = int(gamma)

    N, C, H, W = logits.shape
    HW = H * W
    M = N * HW

    # Free reshapes only (no transpose, no extra HBM pass); keep caller dtypes:
    # bf16 logits stay bf16 on the HBM read (cast to f32 inside the kernel, which
    # is also what v5e needs), int16 targets stay int16.
    x = logits.reshape(N, C, HW)
    assert jnp.issubdtype(targets.dtype, jnp.integer)
    t = targets.reshape(N, 1, HW)
    # TODO(synk): ignore_index / per-class `weight` / reduction='none' of
    # F.nll_loss are not implemented (module defaults: weight=None, 'mean');
    # out-of-range targets contribute a finite wrong value instead of erroring.

    vmem_limit = _vmem_limit_bytes()
    if tile_hw is None:
        t_hw = _pick_tile_hw(HW, C, jnp.dtype(x.dtype).itemsize,
                             jnp.dtype(t.dtype).itemsize, vmem_limit)
    else:
        t_hw = int(min(tile_hw, HW))
        assert t_hw == HW or t_hw % 128 == 0

    grid_hw = pl.cdiv(HW, t_hw)

    # Megacore: when the batch axis alone can't feed both TensorCores (v7x has 2
    # TCs), split the spatial reduction into parallel chunks, one accumulator
    # row per chunk; the extra rows are summed in the wrapper.
    n_chunks = 1 if N >= 2 else min(2, grid_hw)
    steps = pl.cdiv(grid_hw, n_chunks)

    if n_chunks == 1:
        def data_map(n, j):
            return (n, 0, j)
    else:
        def data_map(ns, j):
            blk = (ns % n_chunks) * steps + j
            # Clamp over-cover steps to the last valid block; their contribution
            # is zeroed in-kernel by the col < hw mask.
            return (ns // n_chunks, 0, jnp.minimum(blk, grid_hw - 1))

    partials = pl.pallas_call(
        functools.partial(_focal_loss_kernel, gamma=gamma, hw=HW, t_hw=t_hw,
                          steps=steps, n_chunks=n_chunks),
        out_shape=jax.ShapeDtypeStruct((N * n_chunks, 1, t_hw), jnp.float32),
        grid_spec=pltpu.PrefetchScalarGridSpec(
            num_scalar_prefetch=0,
            grid=(N * n_chunks, steps),
            in_specs=[
                pl.BlockSpec((1, C, t_hw), data_map),
                pl.BlockSpec((1, 1, t_hw), data_map),
            ],
            out_specs=pl.BlockSpec((1, 1, t_hw), lambda ns, j: (ns, 0, 0)),
        ),
        compiler_params=pltpu.CompilerParams(
            dimension_semantics=("parallel", "arbitrary"),
            vmem_limit_bytes=vmem_limit,
        ),
    )(x, t)

    total = jnp.sum(partials)                              # tiny lane-dense reduce
    if reduction == "mean":
        return total / jnp.float32(M)
    elif reduction == "sum":
        return total
    else:
        raise NotImplementedError(reduction)


def focal_loss_ref(logits, targets, gamma=2):
    """Pure-JAX reference mirroring the PyTorch forward (weight=None, mean)."""
    log_prob = jax.nn.log_softmax(logits.astype(jnp.float32), axis=1)
    prob = jnp.exp(log_prob)
    focal = (1.0 - prob) ** gamma * log_prob               # (N, C, H, W)
    gathered = jnp.take_along_axis(
        focal, targets[:, None, :, :].astype(jnp.int32), axis=1)
    return -jnp.mean(gathered)


if __name__ == "__main__":
    key = jax.random.PRNGKey(0)
    k1, k2, k3, k4 = jax.random.split(key, 4)

    # Test 1: module-sized shapes (N=2, C=4, 16x16), single full-HW block path.
    N, C, H, W = 2, 4, 16, 16
    logits = jax.random.normal(k1, (N, C, H, W), dtype=jnp.float32)
    targets = jax.random.randint(k2, (N, H, W), 0, C, dtype=jnp.int32)
    loss = jax.block_until_ready(focal_loss(logits, targets, gamma=2))
    ref = focal_loss_ref(logits, targets, gamma=2)
    assert jnp.allclose(loss, ref, rtol=2e-5, atol=1e-6), (loss, ref)

    # Test 2: N=1 with a forced small tile to exercise the v7x megacore spatial
    # chunk split AND the non-multiple-of-128 tail-lane masking (HW = 660).
    N2, C2, H2, W2 = 1, 3, 20, 33
    logits2 = jax.random.normal(k3, (N2, C2, H2, W2), dtype=jnp.float32)
    targets2 = jax.random.randint(k4, (N2, H2, W2), 0, C2, dtype=jnp.int32)
    loss2 = jax.block_until_ready(focal_loss(logits2, targets2, gamma=2,
                                             tile_hw=128))
    ref2 = focal_loss_ref(logits2, targets2, gamma=2)
    assert jnp.allclose(loss2, ref2, rtol=2e-5, atol=1e-6), (loss2, ref2)

    print("KERNEL_OK")
</pallas_src>

<mosaic_0001>
module attributes {stable_mosaic.version = 11 : i64} {
  func.func @_focal_loss_kernel(%arg0: i32, %arg1: i32, %arg2: memref<1x4x256xf32, #tpu.memory_space<vmem>>, %arg3: memref<1x1x256xi32, #tpu.memory_space<vmem>>, %arg4: memref<1x1x256xf32, #tpu.memory_space<vmem>>) attributes {dimension_semantics = [#tpu.dimension_semantics<parallel>, #tpu.dimension_semantics<arbitrary>], iteration_bounds = array<i64: 2, 1>, scalar_prefetch = 0 : i64, scratch_operands = 0 : i64, tpu.core_type = #tpu.core_type<tc>, window_params = [{transform_indices = @transform_0, window_bounds = array<i64: 1, 4, 256>}, {transform_indices = @transform_1, window_bounds = array<i64: 1, 1, 256>}, {transform_indices = @transform_2, window_bounds = array<i64: 1, 1, 256>}]} {
    %c0 = arith.constant 0 : index
    %c0_0 = arith.constant 0 : index
    %c0_1 = arith.constant 0 : index
    %0 = vector.load %arg2[%c0, %c0_0, %c0_1] : memref<1x4x256xf32, #tpu.memory_space<vmem>>, vector<1x4x256xf32>
    %1 = vector.shape_cast %0 : vector<1x4x256xf32> to vector<4x256xf32>
    %cst = arith.constant dense<0xFF800000> : vector<256xf32>
    %2 = vector.multi_reduction <maximumf>, %1, %cst [0] : vector<4x256xf32> to vector<256xf32>
    %3 = vector.shape_cast %2 : vector<256xf32> to vector<1x256xf32>
    %4 = vector.broadcast %3 : vector<1x256xf32> to vector<4x256xf32>
    %5 = arith.subf %1, %4 : vector<4x256xf32>
    %6 = math.exp %5 : vector<4x256xf32>
    %cst_2 = arith.constant dense<0.000000e+00> : vector<256xf32>
    %7 = vector.multi_reduction <add>, %6, %cst_2 [0] : vector<4x256xf32> to vector<256xf32>
    %8 = vector.shape_cast %7 : vector<256xf32> to vector<1x256xf32>
    %9 = math.log %8 : vector<1x256xf32>
    %c0_3 = arith.constant 0 : index
    %c0_4 = arith.constant 0 : index
    %c0_5 = arith.constant 0 : index
    %10 = vector.load %arg3[%c0_3, %c0_4, %c0_5] : memref<1x1x256xi32, #tpu.memory_space<vmem>>, vector<1x1x256xi32>
    %11 = vector.shape_cast %10 : vector<1x1x256xi32> to vector<1x256xi32>
    %12 = tpu.iota {dimensions = array<i32: 0>} : vector<4x1xi32>
    %13 = vector.broadcast %12 : vector<4x1xi32> to vector<4x256xi32>
    %14 = vector.broadcast %11 : vector<1x256xi32> to vector<4x256xi32>
    %15 = arith.cmpi eq, %13, %14 : vector<4x256xi32>
    %cst_6 = arith.constant 0.000000e+00 : f32
    %16 = vector.broadcast %cst_6 : f32 to vector<4x256xf32>
    %17 = arith.select %15, %5, %16 : vector<4x256xi1>, vector<4x256xf32>
    %cst_7 = arith.constant dense<0.000000e+00> : vector<256xf32>
    %18 = vector.multi_reduction <add>, %17, %cst_7 [0] : vector<4x256xf32> to vector<256xf32>
    %19 = vector.shape_cast %18 : vector<256xf32> to vector<1x256xf32>
    %20 = arith.subf %19, %9 : vector<1x256xf32>
    %21 = math.exp %20 : vector<1x256xf32>
    %cst_8 = arith.constant 1.000000e+00 : f32
    %22 = vector.broadcast %cst_8 : f32 to vector<1x256xf32>
    %23 = arith.subf %22, %21 : vector<1x256xf32>
    %24 = arith.mulf %23, %23 : vector<1x256xf32>
    %cst_9 = arith.constant 0.000000e+00 : f32
    %25 = vector.broadcast %cst_9 : f32 to vector<1x256xf32>
    %26 = arith.subf %25, %24 : vector<1x256xf32>
    %27 = arith.mulf %26, %20 : vector<1x256xf32>
    %c0_i32 = arith.constant 0 : i32
    %28 = arith.cmpi eq, %arg1, %c0_i32 : i32
    %29 = arith.extui %28 : i1 to i32
    %c0_i32_10 = arith.constant 0 : i32
    %30 = arith.cmpi ne, %29, %c0_i32_10 : i32
    scf.if %30 {
      %cst_17 = arith.constant 0.000000e+00 : f32
      %35 = vector.broadcast %cst_17 : f32 to vector<1x1x256xf32>
      %c0_18 = arith.constant 0 : index
      %c0_19 = arith.constant 0 : index
      %c0_20 = arith.constant 0 : index
      %36 = vector.load %arg4[%c0_18, %c0_19, %c0_20] : memref<1x1x256xf32, #tpu.memory_space<vmem>>, vector<1x1x256xf32>
      tpu.vector_store %arg4[%c0_18, %c0_19, %c0_20], %35 {strides = array<i32>} : memref<1x1x256xf32, #tpu.memory_space<vmem>>, vector<1x1x256xf32>,
    } else {
    }
    %c0_11 = arith.constant 0 : index
    %c0_12 = arith.constant 0 : index
    %c0_13 = arith.constant 0 : index
    %31 = vector.load %arg4[%c0_11, %c0_12, %c0_13] : memref<1x1x256xf32, #tpu.memory_space<vmem>>, vector<1x1x256xf32>
    %32 = vector.shape_cast %27 : vector<1x256xf32> to vector<1x1x256xf32>
    %33 = arith.addf %31, %32 : vector<1x1x256xf32>
    %c0_14 = arith.constant 0 : index
    %c0_15 = arith.constant 0 : index
    %c0_16 = arith.constant 0 : index
    %34 = vector.load %arg4[%c0_14, %c0_15, %c0_16] : memref<1x1x256xf32, #tpu.memory_space<vmem>>, vector<1x1x256xf32>
    tpu.vector_store %arg4[%c0_14, %c0_15, %c0_16], %33 {strides = array<i32>} : memref<1x1x256xf32, #tpu.memory_space<vmem>>, vector<1x1x256xf32>,
    return
  }
  func.func @transform_0(%arg0: i32, %arg1: i32) -> (i32, i32, i32) {
    %c0_i32 = arith.constant 0 : i32
    %c0_i32_0 = arith.constant 0 : i32
    return %arg0, %c0_i32, %arg1 : i32, i32, i32
  }
  func.func @transform_1(%arg0: i32, %arg1: i32) -> (i32, i32, i32) {
    %c0_i32 = arith.constant 0 : i32
    %c0_i32_0 = arith.constant 0 : i32
    return %arg0, %c0_i32, %arg1 : i32, i32, i32
  }
  func.func @transform_2(%arg0: i32, %arg1: i32) -> (i32, i32, i32) {
    %c0_i32 = arith.constant 0 : i32
    %c0_i32_0 = arith.constant 0 : i32
    %c0_i32_1 = arith.constant 0 : i32
    return %arg0, %c0_i32, %c0_i32_0 : i32, i32, i32
  }
}

</mosaic_0001>

<llo_original>
// kernel: tpu_custom_call.1
$region0: #{tpu_custom_call.1}
  #allocation0 [shape = 'u32[]', space=smem, size = 0x4, offset = 0x4, fixed_abs, tag = 'smem constant byte address 0x4 - core index']
  #allocation1 [shape = 'u32[144,128]{1,0:T(1,128)}', space=vmem, size = 0x12000, scoped, tag = 'internal scratch']
  %s0 = inlined_call_operand.hbm [shape: f32[2,4,256], index: 0, kind: input, shape index: {}]
  %s1 = inlined_call_operand.hbm [shape: s32[2,1,256], index: 1, kind: input, shape index: {}]
  %s2 = inlined_call_operand.hbm [shape: f32[2,1,256], index: 2, kind: output, shape index: {}]
  %s3 = sld [smem:[#allocation0]]
  $region53: #{tpu_custom_call.1} parent=0
    _
  %s5 = ssub.s32 1, %s3
  %s6 = scalar_select 0, %s5, %s3
  $region1: #{tpu_custom_call.1} parent=0
    #allocation2 [shape = 'u8[8192]{0}', space=vmem, size = 0x2000, scoped, tag = 'input window, operand 0']
    #allocation3 [shape = 's32[2]{0}', space=sflag, size = 0x8, scoped, tag = 'scoped memory for tpu_custom_call.1']
    #allocation4 [shape = 's32[2]{0}', space=sflag, size = 0x8, scoped, tag = 'scoped memory for tpu_custom_call.1']
    #allocation5 [shape = 'u8[2048]{0}', space=vmem, size = 0x800, scoped, tag = 'input window, operand 1']
    #allocation6 [shape = 's32[2]{0}', space=sflag, size = 0x8, scoped, tag = 'scoped memory for tpu_custom_call.1']
    #allocation7 [shape = 'u8[2048]{0}', space=vmem, size = 0x800, scoped, tag = 'output window, operand 0']
    %7 = vsyncpa [#allocation3], 0
    %s8 = scalar_lea.sflag [#allocation3], 1
    %9 = vsyncpa %s8, 0
    %10 = vsyncpa [#allocation6], 0
    %s11 = scalar_lea.sflag [#allocation6], 1
    %12 = vsyncpa %s11, 0
    %13 = vsyncpa [#allocation4], 0
    %s14 = scalar_lea.sflag [#allocation4], 1
    %15 = vsyncpa %s14, 0
    loop: start=0, step=1, limit=4
    $region2: #{tpu_custom_call.1} parent=1 // loop_pre_header
      _
    $region3: #{tpu_custom_call.1} parent=1 // loop_header
      %s17 = sphi 0, %s21
      %p18 = scmp.ge.s32.totalorder %s17, 4
      %s24 = sphi 0, %s36
      %s25 = sphi 0, %s32
      %s26 = sphi 0, %s24
      %s27 = sphi 0, %s25
      %s28 = sphi 0, %s26
      %s29 = sphi 0, %s27
      %s41 = sphi 0, %s43
      %s44 = sphi 0, %s41
      %s45 = sphi 0, %s44
      %s61 = sphi 0, %s45
      %s69 = sphi 0, %s71
      %s72 = sphi 0, %s69
      %s73 = sphi 0, %s72
      %s89 = sphi 0, %s73
      %s95 = sphi 0, %s97
      %s98 = sphi 0, %s95
      %s99 = sphi 0, %s98
      %s115 = sphi 0, %s99
    $region4: #{tpu_custom_call.1} parent=1 // loop_header_branch
      %20 = sbr.rel (%p18) target = $region8
    $region5: #{tpu_custom_call.1} parent=1 // loop_body
      %s22 = ssub.s32 %s17, 1
      %s23 = ssub.s32 %s17, 2
      %s30 = sadd.s32 1, %s25
      %p31 = scmp.ge.s32.totalorder %s30, 1
      %s32 = scalar_select %p31, 0, %s30
      %s33 = sadd.s32 1, %s24
      %s34 = scalar_select %p31, %s33, %s24
      %p35 = scmp.ge.s32.totalorder %s34, 2
      %s36 = scalar_select %p35, 0, %s34
      %s37 = ssub.s32 %s24, %s36
      %s38 = ssub.s32 %s25, %s32
      %s39 = sor.u32 %s37, %s38
      %p40 = scmp.eq.s32.totalorder %s39, 0
      %s42 = sadd.s32 %s41, 1
      %s43 = scalar_select %p40, %s41, %s42
      %p46 = pneg %p40
      %p47 = scmp.eq.s32.totalorder %s17, 1
      %p48 = por %p46, %p47
      %p49 = scmp.ne.s32.totalorder %s41, %s44
      %p50 = scmp.eq.s32.totalorder %s17, 0
      %p51 = por %p49, %p50
      %p52 = scmp.ne.s32.totalorder %s41, %s44
      %p53 = scmp.eq.s32.totalorder %s22, 1
      %p54 = por %p52, %p53
      %p55 = scmp.ne.s32.totalorder %s44, %s45
      %p56 = scmp.eq.s32.totalorder %s22, 0
      %p57 = por %p55, %p56
      %p58 = scmp.ne.s32.totalorder %s44, %s45
      %p59 = scmp.eq.s32.totalorder %s23, 1
      %p60 = por %p58, %p59
      %p62 = scmp.ne.s32.totalorder %s45, %s61
      %p63 = scmp.eq.s32.totalorder %s23, 0
      %p64 = por %p62, %p63
      %s65 = ssub.s32 %s24, %s36
      %s66 = ssub.s32 %s25, %s32
      %s67 = sor.u32 %s65, %s66
      %p68 = scmp.eq.s32.totalorder %s67, 0
      %s70 = sadd.s32 %s69, 1
      %s71 = scalar_select %p68, %s69, %s70
      %p74 = pneg %p68
      %p75 = scmp.eq.s32.totalorder %s17, 1
      %p76 = por %p74, %p75
      %p77 = scmp.ne.s32.totalorder %s69, %s72
      %p78 = scmp.eq.s32.totalorder %s17, 0
      %p79 = por %p77, %p78
      %p80 = scmp.ne.s32.totalorder %s69, %s72
      %p81 = scmp.eq.s32.totalorder %s22, 1
      %p82 = por %p80, %p81
      %p83 = scmp.ne.s32.totalorder %s72, %s73
      %p84 = scmp.eq.s32.totalorder %s22, 0
      %p85 = por %p83, %p84
      %p86 = scmp.ne.s32.totalorder %s72, %s73
      %p87 = scmp.eq.s32.totalorder %s23, 1
      %p88 = por %p86, %p87
      %p90 = scmp.ne.s32.totalorder %s73, %s89
      %p91 = scmp.eq.s32.totalorder %s23, 0
      %p92 = por %p90, %p91
      %s93 = ssub.s32 %s24, %s36
      %p94 = scmp.eq.s32.totalorder %s93, 0
      %s96 = sadd.s32 %s95, 1
      %s97 = scalar_select %p94, %s95, %s96
      %p100 = pneg %p94
      %p101 = scmp.eq.s32.totalorder %s17, 1
      %p102 = por %p100, %p101
      %p103 = scmp.ne.s32.totalorder %s95, %s98
      %p104 = scmp.eq.s32.totalorder %s17, 0
      %p105 = por %p103, %p104
      %p106 = scmp.ne.s32.totalorder %s95, %s98
      %p107 = scmp.eq.s32.totalorder %s22, 1
      %p108 = por %p106, %p107
      %p109 = scmp.ne.s32.totalorder %s98, %s99
      %p110 = scmp.eq.s32.totalorder %s22, 0
      %p111 = por %p109, %p110
      %p112 = scmp.ne.s32.totalorder %s98, %s99
      %p113 = scmp.eq.s32.totalorder %s23, 1
      %p114 = por %p112, %p113
      %p116 = scmp.ne.s32.totalorder %s99, %s115
      %p117 = scmp.eq.s32.totalorder %s23, 0
      %p118 = por %p116, %p117
      %p119 = scmp.le.s32.totalorder 1, %s17
      %p120 = scmp.lt.s32.totalorder %s17, 3
      %p121 = pnand %p119, %p120
      %p122 = pneg %p121
      // Predicated region
      $region9: #{tpu_custom_call.1} parent=5 // pred_check
        _
      $region10: #{tpu_custom_call.1} parent=5 // pred_check_branch
        %124 = sbr.rel (%p121) target = $region12
      $region11: #{tpu_custom_call.1} parent=5 // pred_region
        %s125 = ssub.s32 %s17, 1
      $region12: #{tpu_custom_call.1} parent=5 // pred_fallthru
        _
      %p126 = scmp.lt.s32.totalorder %s17, 2
      // Predicated region
      $region13: #{tpu_custom_call.1} parent=5 // pred_check
        %p127 = pneg %p126
      $region14: #{tpu_custom_call.1} parent=5 // pred_check_branch
        %129 = sbr.rel (%p127) target = $region16
      $region15: #{tpu_custom_call.1} parent=5 // pred_region
        // Predicated region
        $region17: #{tpu_custom_call.1} parent=15 // pred_check
          %p130 = pneg %p51
        $region18: #{tpu_custom_call.1} parent=15 // pred_check_branch
          %132 = sbr.rel (%p130) target = $region20
        $region19: #{tpu_custom_call.1} parent=15 // pred_region
          %s133 = sand.u32 %s41, 1
          %s134 = scalar_lea.sflag [#allocation3], %s133
          %s135 = sand.u32 %s41, 1
          %s136 = smul.addr %s135, 8
          %s137 = scalar_lea.vmem [#allocation2], %s136
          %s138 = smul.u32 2, %s25
          %s140 = ssub.s32 128, 128
          %141 = vsyncadd %s134, %s140
          %s142 = smul.addr %s24, 2
          %s143 = sadd.s32 %s138, %s142
          %s144 = smul.addr %s143, 64
          %s145 = scalar_lea.hbm %s0, %s144
          %s147 = sshll.u32 %s137, 4
          %s148 = int_to_ptr.vmem [resolvable:$true] %s147
          %150 = dma.hbm_to_vmem [thread:$0]  %s145, 128, %s148, %s134
        $region20: #{tpu_custom_call.1} parent=15 // pred_fallthru
          _
        // Predicated region
        $region21: #{tpu_custom_call.1} parent=15 // pred_check
          %p151 = pneg %p79
        $region22: #{tpu_custom_call.1} parent=15 // pred_check_branch
          %153 = sbr.rel (%p151) target = $region24
        $region23: #{tpu_custom_call.1} parent=15 // pred_region
          %s154 = sand.u32 %s69, 1
          %s155 = scalar_lea.sflag [#allocation6], %s154
          %s156 = sand.u32 %s69, 1
          %s157 = smul.addr %s156, 2
          %s158 = scalar_lea.vmem [#allocation5], %s157
          %s159 = smul.u32 2, %s25
          %s161 = ssub.s32 32, 32
          %162 = vsyncadd %s155, %s161
          %s163 = smul.addr %s24, 2
          %s164 = sadd.s32 %s159, %s163
          %s165 = smul.addr %s164, 16
          %s166 = scalar_lea.hbm %s1, %s165
          %s168 = sshll.u32 %s158, 4
          %s169 = int_to_ptr.vmem [resolvable:$true] %s168
          %171 = dma.hbm_to_vmem [thread:$0]  %s166, 32, %s169, %s155
        $region24: #{tpu_custom_call.1} parent=15 // pred_fallthru
          _
      $region16: #{tpu_custom_call.1} parent=5 // pred_fallthru
        _
      %p172 = scmp.le.s32.totalorder 1, %s17
      %p173 = scmp.lt.s32.totalorder %s17, 3
      %p174 = pnand %p172, %p173
      %p175 = pneg %p174
      // Predicated region
      $region25: #{tpu_custom_call.1} parent=5 // pred_check
        _
      $region26: #{tpu_custom_call.1} parent=5 // pred_check_branch
        %177 = sbr.rel (%p174) target = $region28
      $region27: #{tpu_custom_call.1} parent=5 // pred_region
        %s178 = ssub.s32 %s17, 1
        %s179 = sand.u32 %s44, 1
        %s180 = scalar_lea.sflag [#allocation3], %s179
        %s181 = sand.u32 %s44, 1
        %s182 = smul.addr %s181, 8
        %s183 = scalar_lea.vmem [#allocation2], %s182
        // Predicated region
        $region29: #{tpu_custom_call.1} parent=27 // pred_check
          %p184 = pneg %p57
        $region30: #{tpu_custom_call.1} parent=27 // pred_check_branch
          %186 = sbr.rel (%p184) target = $region32
        $region31: #{tpu_custom_call.1} parent=27 // pred_region
          %187 = dma.done %s180, 128
        $region32: #{tpu_custom_call.1} parent=27 // pred_fallthru
          _
        %s188 = sand.u32 %s72, 1
        %s189 = scalar_lea.sflag [#allocation6], %s188
        %s190 = sand.u32 %s72, 1
        %s191 = smul.addr %s190, 2
        %s192 = scalar_lea.vmem [#allocation5], %s191
        // Predicated region
        $region33: #{tpu_custom_call.1} parent=27 // pred_check
          %p193 = pneg %p85
        $region34: #{tpu_custom_call.1} parent=27 // pred_check_branch
          %195 = sbr.rel (%p193) target = $region36
        $region35: #{tpu_custom_call.1} parent=27 // pred_region
          %196 = dma.done %s189, 32
        $region36: #{tpu_custom_call.1} parent=27 // pred_fallthru
          _
        %s197 = sand.u32 %s44, 1
        %s198 = scalar_lea.sflag [#allocation3], %s197
        %s199 = sand.u32 %s44, 1
        %s200 = smul.addr %s199, 8
        %s201 = scalar_lea.vmem [#allocation2], %s200
        %p202 = pneg %p57
        %p203 = pneg %p54
        %s204 = sand.u32 %s72, 1
        %s205 = scalar_lea.sflag [#allocation6], %s204
        %s206 = sand.u32 %s72, 1
        %s207 = smul.addr %s206, 2
        %s208 = scalar_lea.vmem [#allocation5], %s207
        %p209 = pneg %p85
        %p210 = pneg %p82
        %p211 = pneg %p111
        %p212 = pneg %p108
        %s213 = sand.u32 %s98, 1
        %s214 = scalar_lea.sflag [#allocation4], %s213
        %s215 = sand.u32 %s98, 1
        %s216 = smul.addr %s215, 2
        %s217 = scalar_lea.vmem [#allocation7], %s216
        %s218 = smul.u32 2, %s27
        %s219 = smul.u32 2, %s27
        %v220 = vld [vmem:[%s183] sm:$0xff]
        %v222 = vcombine.high %v220, %v220
        %vm224 = vcmask 1043456
        %v225 = vsel %vm224, %v220, -inf
        %v226 = vrot.slane %v225, 4
        %v227 = vmax.f32 %v225, %v226
        %v228 = vrot.slane %v227, 2
        %v229 = vmax.f32 %v227, %v228
        %v230 = vrot.slane %v229, 1
        %v231 = vmax.f32 %v229, %v230
        %v232 = vsel %vm224, %v222, -inf
        %v233 = vrot.slane %v232, 4
        %v234 = vmax.f32 %v232, %v233
        %v235 = vrot.slane %v234, 2
        %v236 = vmax.f32 %v234, %v235
        %v237 = vrot.slane %v236, 1
        %v238 = vmax.f32 %v236, %v237
        %v241 = vcombine.low %v231, %v238
        %v243 = vsub.f32 %v220, %v241
        %v244 = vmul.f32 %v243, 1.442695
        %v245 = vpow.pop %v244
        %v247 = vcombine.high %v245, %v245
        %v249 = vsel %vm224, %v245, 0.0
        %v250 = vrot.slane %v249, 4
        %v251 = vadd.f32 %v249, %v250
        %v252 = vrot.slane %v251, 2
        %v253 = vadd.f32 %v251, %v252
        %v254 = vrot.slane %v253, 1
        %v255 = vadd.f32 %v253, %v254
        %v256 = vsel %vm224, %v247, 0.0
        %v257 = vrot.slane %v256, 4
        %v258 = vadd.f32 %v256, %v257
        %v259 = vrot.slane %v258, 2
        %v260 = vadd.f32 %v258, %v259
        %v261 = vrot.slane %v260, 1
        %v262 = vadd.f32 %v260, %v261
        %v263 = vlog2.pop %v255
        %v264 = vmul.f32 %v263, 0.6931472
        %v265 = vlog2.pop %v262
        %v266 = vmul.f32 %v265, 0.6931472
        %v267 = vld [vmem:[%s192] sm:$0x3]
        %v268 = vlaneseq
        %v269 = vshrl.u32 %v268, 7
        %v270 = vlaneseq
        %v271 = vshrl.u32 %v270, 7
        %v272 = vsub.s32 0, %v271
        %v273 = vrot.slane %v267, %v272
        %v274 = vlaneseq
        %v275 = vshrl.u32 %v274, 7
        %v276 = vsub.s32 1, %v275
        %v277 = vrot.slane %v267, %v276
        %vm278 = vcmp.eq.s32.totalorder %v269, %v273
        %vm279 = vcmp.eq.s32.totalorder %v269, %v277
        %v281 = vcombine.high %v243, %v243
        %v283 = vsel %vm278, %v243, 0.0
        %v284 = vsel %vm279, %v281, 0.0
        %v285 = vsel %vm224, %v283, 0.0
        %v286 = vrot.slane %v285, 4
        %v287 = vadd.f32 %v285, %v286
        %v288 = vrot.slane %v287, 2
        %v289 = vadd.f32 %v287, %v288
        %v290 = vrot.slane %v289, 1
        %v291 = vadd.f32 %v289, %v290
        %v292 = vsel %vm224, %v284, 0.0
        %v293 = vrot.slane %v292, 4
        %v294 = vadd.f32 %v292, %v293
        %v295 = vrot.slane %v294, 2
        %v296 = vadd.f32 %v294, %v295
        %v297 = vrot.slane %v296, 1
        %v298 = vadd.f32 %v296, %v297
        %v299 = vsub.f32 %v291, %v264
        %v300 = vsub.f32 %v298, %v266
        %v301 = vmul.f32 %v299, 1.442695
        %v302 = vpow.pop %v301
        %v303 = vmul.f32 %v300, 1.442695
        %v304 = vpow.pop %v303
        %v305 = vsub.f32 1.0, %v302
        %v306 = vsub.f32 1.0, %v304
        %v307 = vmul.f32 %v305, %v305
        %v308 = vmul.f32 %v306, %v306
        %v309 = vsub.f32 0.0, %v307
        %v310 = vsub.f32 0.0, %v308
        %v311 = vmul.f32 %v309, %v299
        %v312 = vmul.f32 %v310, %v300
        %p313 = scmp.eq.s32.totalorder %s27, 0
        // Predicated region
        $region37: #{tpu_custom_call.1} parent=27 // pred_check
          %p314 = pneg %p313
        $region38: #{tpu_custom_call.1} parent=27 // pred_check_branch
          %316 = sbr.rel (%p314) target = $region40
        $region39: #{tpu_custom_call.1} parent=27 // pred_region
          %v317 = vlaneseq
          %vm318 = vcmp.ge.s32.totalorder %v317, 0
          %vm319 = vcmp.lt.s32.totalorder %v317, 256
          %vm320 = vmand %vm318, %vm319
          %321 = vst.msk [vmem:[%s217] sm:$0x3] %vm320, 0.0
        $region40: #{tpu_custom_call.1} parent=27 // pred_fallthru
          _
        %v322 = vld [vmem:[%s217] sm:$0x3]
        %v325 = vcombine.low %v311, %v312
        %v327 = vunpack.c.l.s4 1966171168
        %v328 = vunpack.c.0.s8 %v327
        %v329 = vlaneseq
        %v330 = vshrl.u32 %v329, 7
        %v331 = vsub.s32 %v328, %v330
        %v332 = vrot.slane %v325, %v331
        %v334 = vunpack.c.l.s4 1966171168
        %v335 = vunpack.c.0.s8 %v334
        %v336 = vlaneseq
        %v337 = vshrl.u32 %v336, 7
        %v338 = vsub.s32 %v335, %v337
        %v339 = vrot.slane %v332, %v338
        %v341 = vadd.f32 %v322, %v339
        %v342 = vlaneseq
        %vm343 = vcmp.ge.s32.totalorder %v342, 0
        %vm344 = vcmp.lt.s32.totalorder %v342, 256
        %vm345 = vmand %vm343, %vm344
        %346 = vst.msk [vmem:[%s217] sm:$0x3] %vm345, %v341
        %s347 = sand.u32 %s98, 1
        %s348 = scalar_lea.sflag [#allocation4], %s347
        %s349 = sand.u32 %s98, 1
        %s350 = smul.addr %s349, 2
        %s351 = scalar_lea.vmem [#allocation7], %s350
        // Predicated region
        $region41: #{tpu_custom_call.1} parent=27 // pred_check
          %p352 = pneg %p108
        $region42: #{tpu_custom_call.1} parent=27 // pred_check_branch
          %354 = sbr.rel (%p352) target = $region44
        $region43: #{tpu_custom_call.1} parent=27 // pred_region
          %s356 = ssub.s32 32, 32
          %357 = vsyncadd %s348, %s356
          %s358 = smul.addr %s26, 2
          %s359 = smul.addr %s358, 16
          %s360 = scalar_lea.hbm %s2, %s359
          %s362 = sshll.u32 %s351, 4
          %s363 = int_to_ptr.vmem [resolvable:$true] %s362
          %365 = dma.vmem_to_hbm [thread:$0]  %s363, 32, %s360, %s348
        $region44: #{tpu_custom_call.1} parent=27 // pred_fallthru
          _
      $region28: #{tpu_custom_call.1} parent=5 // pred_fallthru
        _
      %p366 = scmp.le.s32.totalorder 2, %s17
      // Predicated region
      $region45: #{tpu_custom_call.1} parent=5 // pred_check
        %p367 = pneg %p366
      $region46: #{tpu_custom_call.1} parent=5 // pred_check_branch
        %369 = sbr.rel (%p367) target = $region48
      $region47: #{tpu_custom_call.1} parent=5 // pred_region
        %s370 = ssub.s32 %s17, 2
        // Predicated region
        $region49: #{tpu_custom_call.1} parent=47 // pred_check
          %p371 = pneg %p114
        $region50: #{tpu_custom_call.1} parent=47 // pred_check_branch
          %373 = sbr.rel (%p371) target = $region52
        $region51: #{tpu_custom_call.1} parent=47 // pred_region
          %s374 = sand.u32 %s99, 1
          %s375 = scalar_lea.sflag [#allocation4], %s374
          %s376 = sand.u32 %s99, 1
          %s377 = smul.addr %s376, 2
          %s378 = scalar_lea.vmem [#allocation7], %s377
          %379 = dma.done %s375, 32
        $region52: #{tpu_custom_call.1} parent=47 // pred_fallthru
          _
      $region48: #{tpu_custom_call.1} parent=5 // pred_fallthru
        _
    $region6: #{tpu_custom_call.1} parent=1 // loop_footer
      %s21 = sadd.s32 1, %s17
    $region7: #{tpu_custom_call.1} parent=1 // loop_footer_branch
      %16 = sbr.rel target = $region3
    $region8: #{tpu_custom_call.1} parent=1 // loop_exit
      _
    %380 = vsyncpa [#allocation3], 1
    %s381 = scalar_lea.sflag [#allocation3], 1
    %382 = vsyncpa %s381, 1
    %383 = vsyncpa [#allocation6], 1
    %s384 = scalar_lea.sflag [#allocation6], 1
    %385 = vsyncpa %s384, 1
    %386 = vsyncpa [#allocation4], 1
    %s387 = scalar_lea.sflag [#allocation4], 1
    %388 = vsyncpa %s387, 1

</llo_original>
